<compile_context>
chip_gen: v7x
topology: tpu7x:2x2x1
jax: 0.10.0
libtpu: 0.0.40
codegen_flags: <defaults>
</compile_context>

<pallas_src>
import jax
import jax.numpy as jnp
from jax.experimental import pallas as pl
from jax.experimental.pallas import tpu as pltpu


def _touch_kernel(pred_ref, tgt_ref, out_ref):
    # Trivial elementwise pass over the full (tile-aligned) arrays resident in
    # VMEM.  The reference forward performs no tensor math; this exists only
    # to demonstrate a correct, minimal-overhead Pallas lowering.  Single
    # full-tile assignment -> one unmasked full-width vector store.
    out_ref[...] = pred_ref[...] - tgt_ref[...]


@jax.jit
def _device_touch_jit(predictions: jax.Array, target: jax.Array) -> jax.Array:
    return pl.pallas_call(
        _touch_kernel,
        out_shape=jax.ShapeDtypeStruct(predictions.shape, predictions.dtype),
        in_specs=[
            pl.BlockSpec(memory_space=pltpu.VMEM),
            pl.BlockSpec(memory_space=pltpu.VMEM),
        ],
        out_specs=pl.BlockSpec(memory_space=pltpu.VMEM),
    )(predictions, target)


def device_touch(predictions: jax.Array, target: jax.Array) -> jax.Array:
    """Demonstration-only Pallas TPU kernel over the loss inputs.

    NOT part of the loss path.  Kept for test/demo purposes under __main__.
    Shape/dtype validation happens here, outside the jitted function, so it
    actually guards at call time instead of silently vanishing after trace.
    """
    if predictions.shape != target.shape:
        raise ValueError(
            f"shape mismatch: {predictions.shape} vs {target.shape}")
    if predictions.dtype != target.dtype:
        raise ValueError(
            f"dtype mismatch: {predictions.dtype} vs {target.dtype}")
    return _device_touch_jit(predictions, target)


def model_loss(predictions, target):
    """Equivalent of ModelLoss.forward.

    The PyTorch module ignores both inputs and returns the string '123'.
    Per the performance review, this path launches no device work and
    performs no host/device synchronization whatsoever.
    """
    del predictions, target  # ignored by the reference module
    # TODO(synk): returning a Python string has no Pallas/array equivalent;
    # we reproduce the reference semantics exactly by returning '123' here.
    loss = '123'
    return loss


if __name__ == "__main__":
    key = jax.random.PRNGKey(0)
    kp, kt = jax.random.split(key)
    # Small but tile-aligned shapes consistent with a classification loss
    # ([batch, num_classes]): (8, 128) f32 = exactly one (8,128) vreg tile,
    # so the Pallas demo kernel uses full-width unmasked loads/stores.
    predictions = jax.random.normal(kp, (8, 128), dtype=jnp.float32)
    target = jax.random.normal(kt, (8, 128), dtype=jnp.float32)

    # Exercise the demonstration Pallas kernel once (test-gated: __main__ only)
    # and block on its result.
    touch = device_touch(predictions, target)
    jax.block_until_ready(touch)

    # Module-equivalent forward: pure Python, zero device work.
    loss = model_loss(predictions, target)
    assert loss == '123', f"unexpected loss value: {loss!r}"
    print("KERNEL_OK")
</pallas_src>

<mosaic_0001>
module attributes {stable_mosaic.version = 11 : i64} {
  func.func @_touch_kernel(%arg0: memref<8x128xf32, #tpu.memory_space<vmem>>, %arg1: memref<8x128xf32, #tpu.memory_space<vmem>>, %arg2: memref<8x128xf32, #tpu.memory_space<vmem>>) attributes {dimension_semantics = [], scalar_prefetch = 0 : i64, scratch_operands = 0 : i64, tpu.core_type = #tpu.core_type<tc>} {
    %c0 = arith.constant 0 : index
    %c0_0 = arith.constant 0 : index
    %0 = vector.load %arg0[%c0, %c0_0] : memref<8x128xf32, #tpu.memory_space<vmem>>, vector<8x128xf32>
    %c0_1 = arith.constant 0 : index
    %c0_2 = arith.constant 0 : index
    %1 = vector.load %arg1[%c0_1, %c0_2] : memref<8x128xf32, #tpu.memory_space<vmem>>, vector<8x128xf32>
    %2 = arith.subf %0, %1 : vector<8x128xf32>
    %c0_3 = arith.constant 0 : index
    %c0_4 = arith.constant 0 : index
    %3 = vector.load %arg2[%c0_3, %c0_4] : memref<8x128xf32, #tpu.memory_space<vmem>>, vector<8x128xf32>
    tpu.vector_store %arg2[%c0_3, %c0_4], %2 {strides = array<i32>} : memref<8x128xf32, #tpu.memory_space<vmem>>, vector<8x128xf32>,
    return
  }
}

</mosaic_0001>

<llo_original>
// kernel: _device_touch_jit.1
$region0: #{_device_touch_jit.1}
  #allocation0 [shape = 'u32[]', space=smem, size = 0x4, offset = 0x4, fixed_abs, tag = 'smem constant byte address 0x4 - core index']
  #allocation1 [shape = 'u32[144,128]{1,0:T(1,128)}', space=vmem, size = 0x12000, scoped, tag = 'internal scratch']
  %s0 = inlined_call_operand.hbm [shape: f32[8,128], index: 0, kind: input, shape index: {}]
  %s1 = inlined_call_operand.hbm [shape: f32[8,128], index: 1, kind: input, shape index: {}]
  %s2 = inlined_call_operand.hbm [shape: f32[8,128], index: 2, kind: output, shape index: {}]
  %s3 = sld [smem:[#allocation0]]
  $region26: #{_device_touch_jit.1} parent=0
    _
  %s5 = ssub.s32 1, %s3
  %s6 = scalar_select 0, %s5, %s3
  $region1: #{_device_touch_jit.1} parent=0
    #allocation2 [shape = 'u8[4096]{0}', space=vmem, size = 0x1000, scoped, tag = 'input window, operand 0, single buffered']
    #allocation3 [shape = 's32[1]{0}', space=sflag, size = 0x4, scoped, tag = 'scoped memory for _device_touch_jit.1']
    #allocation4 [shape = 's32[1]{0}', space=sflag, size = 0x4, scoped, tag = 'scoped memory for _device_touch_jit.1']
    #allocation5 [shape = 'u8[4096]{0}', space=vmem, size = 0x1000, scoped, tag = 'input window, operand 1, single buffered']
    #allocation6 [shape = 's32[1]{0}', space=sflag, size = 0x4, scoped, tag = 'scoped memory for _device_touch_jit.1']
    #allocation7 [shape = 'u8[4096]{0}', space=vmem, size = 0x1000, scoped, tag = 'output window, operand 0, single buffered']
    %7 = vsyncpa [#allocation3], 0
    %8 = vsyncpa [#allocation6], 0
    %9 = vsyncpa [#allocation4], 0
    // Predicated region
    $region2: #{_device_touch_jit.1} parent=1 // pred_check
      _
    $region3: #{_device_touch_jit.1} parent=1 // pred_check_branch
      %11 = sbr.rel (0) target = $region5
    $region4: #{_device_touch_jit.1} parent=1 // pred_region
      %s13 = ssub.s32 128, 128
      %14 = vsyncadd [#allocation3], %s13
      %s16 = sshll.u32 [#allocation2], 4
      %s17 = int_to_ptr.vmem [resolvable:$true] %s16
      %19 = dma.hbm_to_vmem [thread:$0]  %s0, 128, %s17, [#allocation3]
    $region5: #{_device_touch_jit.1} parent=1 // pred_fallthru
      _
    // Predicated region
    $region6: #{_device_touch_jit.1} parent=1 // pred_check
      _
    $region7: #{_device_touch_jit.1} parent=1 // pred_check_branch
      %21 = sbr.rel (0) target = $region9
    $region8: #{_device_touch_jit.1} parent=1 // pred_region
      %s23 = ssub.s32 128, 128
      %24 = vsyncadd [#allocation6], %s23
      %s26 = sshll.u32 [#allocation5], 4
      %s27 = int_to_ptr.vmem [resolvable:$true] %s26
      %29 = dma.hbm_to_vmem [thread:$0]  %s1, 128, %s27, [#allocation6]
    $region9: #{_device_touch_jit.1} parent=1 // pred_fallthru
      _
    // Predicated region
    $region10: #{_device_touch_jit.1} parent=1 // pred_check
      _
    $region11: #{_device_touch_jit.1} parent=1 // pred_check_branch
      %31 = sbr.rel (0) target = $region13
    $region12: #{_device_touch_jit.1} parent=1 // pred_region
      %32 = dma.done [#allocation3], 128
    $region13: #{_device_touch_jit.1} parent=1 // pred_fallthru
      _
    // Predicated region
    $region14: #{_device_touch_jit.1} parent=1 // pred_check
      _
    $region15: #{_device_touch_jit.1} parent=1 // pred_check_branch
      %34 = sbr.rel (0) target = $region17
    $region16: #{_device_touch_jit.1} parent=1 // pred_region
      %35 = dma.done [#allocation6], 128
    $region17: #{_device_touch_jit.1} parent=1 // pred_fallthru
      _
    %v36 = vld [vmem:[#allocation2] sm:$0xff]
    %v37 = vld [vmem:[#allocation5] sm:$0xff]
    %v38 = vsub.f32 %v36, %v37
    %39 = vst [vmem:[#allocation7] sm:$0xff] %v38
    // Predicated region
    $region18: #{_device_touch_jit.1} parent=1 // pred_check
      _
    $region19: #{_device_touch_jit.1} parent=1 // pred_check_branch
      %41 = sbr.rel (0) target = $region21
    $region20: #{_device_touch_jit.1} parent=1 // pred_region
      %s43 = ssub.s32 128, 128
      %44 = vsyncadd [#allocation4], %s43
      %s46 = sshll.u32 [#allocation7], 4
      %s47 = int_to_ptr.vmem [resolvable:$true] %s46
      %49 = dma.vmem_to_hbm [thread:$0]  %s47, 128, %s2, [#allocation4]
    $region21: #{_device_touch_jit.1} parent=1 // pred_fallthru
      _
    // Predicated region
    $region22: #{_device_touch_jit.1} parent=1 // pred_check
      _
    $region23: #{_device_touch_jit.1} parent=1 // pred_check_branch
      %51 = sbr.rel (0) target = $region25
    $region24: #{_device_touch_jit.1} parent=1 // pred_region
      %52 = dma.done [#allocation4], 128
    $region25: #{_device_touch_jit.1} parent=1 // pred_fallthru
      _
    %53 = vsyncpa [#allocation3], 1
    %54 = vsyncpa [#allocation6], 1
    %55 = vsyncpa [#allocation4], 1

</llo_original>
